<compile_context>
chip_gen: v5e
topology: v5e:2x2
jax: 0.10.0
libtpu: 0.0.40
codegen_flags: <defaults>
</compile_context>

<pallas_src>
import functools

import numpy as np

import jax
import jax.numpy as jnp
from jax.experimental import pallas as pl
from jax.experimental.pallas import tpu as pltpu


# Max batch items per grid step.  Per item the input block is ~27->32 padded
# sublanes x 256 lanes x 4B ~= 32 KiB and the output ~8 KiB; double-buffered
# that is ~80 KiB/item, so 32 items stay ~2.5 MiB -- far below v5e's 16 MiB
# scoped-VMEM default (and v7x's 64 MiB physical VMEM).
_BB_CAP = 32


def _conv_tanh_kernel(*refs, bb, use_mask):
    """refs = (w_ref[, mask_ref], x_ref, o_ref).

    w_ref:    (cout, ntap) f32 VMEM tile (whole conv weight).
    mask_ref: (1, hw) f32 inverted-dropout keep-mask (only when use_mask).
    x_ref:    (bb, ntap, hw) im2col'd input block (lane-dense last dim).
    o_ref:    (bb, cout, hw) output block in x.dtype (lane-dense stores).
    """
    if use_mask:
        w_ref, m_ref, x_ref, o_ref = refs
        mask = m_ref[...]                       # (1, hw); broadcasts over cout
    else:
        w_ref, x_ref, o_ref = refs

    w = w_ref[...]                              # read once; batch-invariant
    for b in range(bb):                         # bb is small & static (<= _BB_CAP)
        xb = x_ref[b].astype(jnp.float32)       # (ntap, hw), f32 accumulate path
        y = jnp.dot(w, xb,
                    preferred_element_type=jnp.float32,
                    precision=jax.lax.Precision.HIGHEST)      # (cout, hw)
        y = jnp.tanh(y)
        if use_mask:
            y = y * mask
        o_ref[b] = y.astype(o_ref.dtype)


def _tensorcores_per_chip() -> int:
    """TensorCores per chip (v7x: 2, v5e/v6e: 1).  Perf heuristic only; never raises."""
    try:
        info = pltpu.get_tpu_info()
        for attr in ("num_cores", "cores_per_chip", "num_tensorcores",
                     "tensorcores_per_chip", "core_count"):
            v = getattr(info, attr, None)
            if isinstance(v, int) and v > 0:
                return v
    except Exception:
        pass
    try:
        kind = jax.devices()[0].device_kind.lower()
        return 2 if ("v7" in kind or "7x" in kind) else 1
    except Exception:
        return 1


def _pick_bb(n: int, num_cores: int) -> int:
    """Batch items per grid step: one step per core, capped, dividing n."""
    target = min(_BB_CAP, max(1, -(-n // max(1, num_cores))))   # ceil(n / cores)
    bb = target
    while n % bb != 0:
        bb -= 1
    return bb


def _circular_tap_indices(h: int, w: int, kh: int, kw: int) -> jnp.ndarray:
    """(kh*kw, h*w) int32: flat source pixel per (tap, output pixel), circular wrap."""
    ph, pw = kh // 2, kw // 2
    ii = np.arange(h)
    jj = np.arange(w)
    idx = np.empty((kh * kw, h * w), dtype=np.int32)
    for ky in range(kh):
        for kx in range(kw):
            src_i = (ii + ky - ph) % h
            src_j = (jj + kx - pw) % w
            idx[ky * kw + kx] = (src_i[:, None] * w + src_j[None, :]).reshape(-1)
    return jnp.asarray(idx)


def convolution_model_forward(x, weight, p_agent_dropout: float = 0.0,
                              dropout_seed: int = 0):
    """x: (N, Cin, H, W); weight: (Cout, Cin, KH, KW) (bias=False).

    Returns tanh(conv(x, weight; 'same', circular)) * dropout_mask, in x.dtype.
    """
    n, cin, h, w = x.shape
    cout, cin_w, kh, kw = weight.shape
    assert cin == cin_w
    hw = h * w
    ntap = cin * kh * kw
    p = float(p_agent_dropout)

    # Circular 'same' im2col via a single static gather (one fused XLA op,
    # no 9x roll+stack).  Last dim H*W is a multiple of 128 -> lane-dense.
    idx = _circular_tap_indices(h, w, kh, kw)                  # (kh*kw, hw)
    xcol = jnp.take(x.reshape(n, cin, hw), idx, axis=2)        # (n, cin, kh*kw, hw)
    xcol = xcol.reshape(n, ntap, hw)                           # (ci, ky, kx) tap order

    w2d = weight.astype(jnp.float32).reshape(cout, ntap)       # (cout, ntap) VMEM tile

    bb = _pick_bb(n, _tensorcores_per_chip())
    grid = (n // bb,)

    in_specs = [pl.BlockSpec((cout, ntap), lambda i: (0, 0))]  # weights, resident
    args = [w2d]
    if p > 0.0:
        # nn.Dropout applied to ones(H, W): one spatial Bernoulli keep-mask
        # scaled by 1/(1-p), shared across batch and channels.  Built once in
        # the wrapper and reused by every grid step.
        keep = jax.random.bernoulli(jax.random.PRNGKey(dropout_seed), 1.0 - p, (1, hw))
        mask = keep.astype(jnp.float32) / (1.0 - p)
        in_specs.append(pl.BlockSpec((1, hw), lambda i: (0, 0)))
        args.append(mask)
    in_specs.append(pl.BlockSpec((bb, ntap, hw), lambda i: (i, 0, 0)))
    args.append(xcol)

    kernel = functools.partial(_conv_tanh_kernel, bb=bb, use_mask=(p > 0.0))

    out = pl.pallas_call(
        kernel,
        out_shape=jax.ShapeDtypeStruct((n, cout, hw), x.dtype),
        grid_spec=pltpu.PrefetchScalarGridSpec(
            num_scalar_prefetch=0,
            grid=grid,
            in_specs=in_specs,
            out_specs=pl.BlockSpec((bb, cout, hw), lambda i: (i, 0, 0)),
        ),
        compiler_params=pltpu.CompilerParams(
            dimension_semantics=("parallel",)),
    )(*args)
    return out.reshape(n, cout, h, w)


def _reference_forward(x, weight):
    ph, pw = weight.shape[2] // 2, weight.shape[3] // 2
    x_pad = jnp.pad(x, ((0, 0), (0, 0), (ph, ph), (pw, pw)), mode="wrap")
    y = jax.lax.conv_general_dilated(
        x_pad, weight, window_strides=(1, 1), padding="VALID",
        dimension_numbers=("NCHW", "OIHW", "NCHW"),
        precision=jax.lax.Precision.HIGHEST)
    return jnp.tanh(y)


if __name__ == "__main__":
    # Module defaults: num_obs_channels=3, num_act_channels=3, kernel_sizes=(3,)
    N, Cin, Cout, H, W, K = 2, 3, 3, 16, 16, 3

    key = jax.random.PRNGKey(0)
    k_x, k_w = jax.random.split(key)
    x = jax.random.normal(k_x, (N, Cin, H, W), dtype=jnp.float32)

    # Xavier-uniform-like init for the conv weight (module uses bias=False).
    fan_in = Cin * K * K
    fan_out = Cout * K * K
    limit = float(np.sqrt(6.0 / (fan_in + fan_out)))
    weight = jax.random.uniform(
        k_w, (Cout, Cin, K, K), dtype=jnp.float32, minval=-limit, maxval=limit)

    # p = 0 (module default) path vs. XLA reference.
    out = jax.block_until_ready(convolution_model_forward(x, weight))
    ref = jax.block_until_ready(_reference_forward(x, weight))
    assert out.shape == (N, Cout, H, W)
    assert jnp.max(jnp.abs(out - ref)) < 1e-4

    # p > 0 agent-dropout path: one spatial keep-mask shared over batch/channels.
    p = 0.5
    out_p = jax.block_until_ready(
        convolution_model_forward(x, weight, p_agent_dropout=p, dropout_seed=0))
    keep = jax.random.bernoulli(jax.random.PRNGKey(0), 1.0 - p, (1, H * W))
    mask = (keep.astype(jnp.float32) / (1.0 - p)).reshape(1, 1, H, W)
    assert jnp.max(jnp.abs(out_p - ref * mask)) < 1e-4

    # TODO(synk): if "agent dropout" is ever meant to drop whole channels
    #             (Dropout2d-style) rather than spatial cells, the (1, H*W)
    #             mask must become per-channel.
    print("KERNEL_OK")
</pallas_src>

<mosaic_0001>
module attributes {stable_mosaic.version = 11 : i64} {
  func.func @_conv_tanh_kernel(%arg0: i32, %arg1: memref<3x27xf32, #tpu.memory_space<vmem>>, %arg2: memref<2x27x256xf32, #tpu.memory_space<vmem>>, %arg3: memref<2x3x256xf32, #tpu.memory_space<vmem>>) attributes {dimension_semantics = [#tpu.dimension_semantics<parallel>], iteration_bounds = array<i64: 1>, scalar_prefetch = 0 : i64, scratch_operands = 0 : i64, tpu.core_type = #tpu.core_type<tc>, window_params = [{pipeline_mode = #tpu.pipeline_mode<synchronous>, transform_indices = @transform_0, window_bounds = array<i64: 3, 27>}, {transform_indices = @transform_1, window_bounds = array<i64: 2, 27, 256>}, {transform_indices = @transform_2, window_bounds = array<i64: 2, 3, 256>}]} {
    %c0 = arith.constant 0 : index
    %c0_0 = arith.constant 0 : index
    %0 = vector.load %arg1[%c0, %c0_0] : memref<3x27xf32, #tpu.memory_space<vmem>>, vector<3x27xf32>
    %c0_1 = arith.constant 0 : index
    %c0_2 = arith.constant 0 : index
    %c0_3 = arith.constant 0 : index
    %1 = vector.load %arg2[%c0_1, %c0_2, %c0_3] : memref<2x27x256xf32, #tpu.memory_space<vmem>>, vector<1x27x256xf32>
    %2 = vector.shape_cast %1 : vector<1x27x256xf32> to vector<27x256xf32>
    %cst = arith.constant dense<0.000000e+00> : vector<3x256xf32>
    %3 = tpu.matmul %0, %2, %cst {dimension_numbers = #tpu.dot_dimension_numbers<[1], [0], [0], [1], [0, 0, 1, 1], [], []>, precision = #tpu.contract_precision<fp32>} : vector<3x27xf32>, vector<27x256xf32>, vector<3x256xf32> -> vector<3x256xf32>
    %4 = math.tanh %3 : vector<3x256xf32>
    %c0_4 = arith.constant 0 : index
    %c0_5 = arith.constant 0 : index
    %c0_6 = arith.constant 0 : index
    %5 = vector.load %arg3[%c0_4, %c0_5, %c0_6] : memref<2x3x256xf32, #tpu.memory_space<vmem>>, vector<1x3x256xf32>
    %6 = vector.shape_cast %5 : vector<1x3x256xf32> to vector<3x256xf32>
    %7 = vector.shape_cast %4 : vector<3x256xf32> to vector<1x3x256xf32>
    tpu.vector_store %arg3[%c0_4, %c0_5, %c0_6], %7 {strides = array<i32>} : memref<2x3x256xf32, #tpu.memory_space<vmem>>, vector<1x3x256xf32>,
    %c1 = arith.constant 1 : index
    %c0_7 = arith.constant 0 : index
    %c0_8 = arith.constant 0 : index
    %8 = vector.load %arg2[%c1, %c0_7, %c0_8] : memref<2x27x256xf32, #tpu.memory_space<vmem>>, vector<1x27x256xf32>
    %9 = vector.shape_cast %8 : vector<1x27x256xf32> to vector<27x256xf32>
    %cst_9 = arith.constant dense<0.000000e+00> : vector<3x256xf32>
    %10 = tpu.matmul %0, %9, %cst_9 {dimension_numbers = #tpu.dot_dimension_numbers<[1], [0], [0], [1], [0, 0, 1, 1], [], []>, precision = #tpu.contract_precision<fp32>} : vector<3x27xf32>, vector<27x256xf32>, vector<3x256xf32> -> vector<3x256xf32>
    %11 = math.tanh %10 : vector<3x256xf32>
    %c1_10 = arith.constant 1 : index
    %c0_11 = arith.constant 0 : index
    %c0_12 = arith.constant 0 : index
    %12 = vector.load %arg3[%c1_10, %c0_11, %c0_12] : memref<2x3x256xf32, #tpu.memory_space<vmem>>, vector<1x3x256xf32>
    %13 = vector.shape_cast %12 : vector<1x3x256xf32> to vector<3x256xf32>
    %14 = vector.shape_cast %11 : vector<3x256xf32> to vector<1x3x256xf32>
    tpu.vector_store %arg3[%c1_10, %c0_11, %c0_12], %14 {strides = array<i32>} : memref<2x3x256xf32, #tpu.memory_space<vmem>>, vector<1x3x256xf32>,
    return
  }
  func.func @transform_0(%arg0: i32) -> (i32, i32) {
    %c0_i32 = arith.constant 0 : i32
    %c0_i32_0 = arith.constant 0 : i32
    %c0_i32_1 = arith.constant 0 : i32
    return %c0_i32, %c0_i32_0 : i32, i32
  }
  func.func @transform_1(%arg0: i32) -> (i32, i32, i32) {
    %c0_i32 = arith.constant 0 : i32
    %c0_i32_0 = arith.constant 0 : i32
    %c0_i32_1 = arith.constant 0 : i32
    return %arg0, %c0_i32, %c0_i32_0 : i32, i32, i32
  }
  func.func @transform_2(%arg0: i32) -> (i32, i32, i32) {
    %c0_i32 = arith.constant 0 : i32
    %c0_i32_0 = arith.constant 0 : i32
    %c0_i32_1 = arith.constant 0 : i32
    return %arg0, %c0_i32, %c0_i32_0 : i32, i32, i32
  }
}

</mosaic_0001>

<llo_original>
// kernel: tpu_custom_call.1
$region0: #{tpu_custom_call.1}
  #allocation0 [shape = 'u32[]', space=smem, size = 0x4, offset = 0x4, fixed_abs, tag = 'smem constant byte address 0x4 - core index']
  #allocation1 [shape = 'u32[72,128]{1,0:T(1,128)}', space=vmem, size = 0x9000, scoped, tag = 'internal scratch']
  %s0 = inlined_call_operand.vmem [shape: f32[3,27], index: 0, kind: input, shape index: {}]
  %s1 = inlined_call_operand.vmem [shape: f32[2,27,256], index: 1, kind: input, shape index: {}]
  %s2 = inlined_call_operand.vmem [shape: f32[2,3,256], index: 2, kind: output, shape index: {}]
  %s3 = sld [smem:[#allocation0]]
  $region18: #{tpu_custom_call.1} parent=0
    _
  %s5 = ssub.s32 1, %s3
  %s6 = scalar_select 0, %s5, %s3
  // Predicated region
  $region2: #{tpu_custom_call.1} parent=0 // pred_check
    _
  $region3: #{tpu_custom_call.1} parent=0 // pred_check_branch
    %8 = sbr.rel (0) target = $region5
  $region4: #{tpu_custom_call.1} parent=0 // pred_region
    _
  $region5: #{tpu_custom_call.1} parent=0 // pred_fallthru
    _
  // Predicated region
  $region6: #{tpu_custom_call.1} parent=0 // pred_check
    _
  $region7: #{tpu_custom_call.1} parent=0 // pred_check_branch
    %10 = sbr.rel (0) target = $region9
  $region8: #{tpu_custom_call.1} parent=0 // pred_region
    _
  $region9: #{tpu_custom_call.1} parent=0 // pred_fallthru
    _
  %v11 = vld [vmem:[%s0] sm:$0x7]
  %v12 = vld [vmem:[%s1] sm:$0xff]
  %v13 = vld [vmem:[%s1 + $0x8] sm:$0xff]
  %v14 = vld [vmem:[%s1 + $0x10] sm:$0xff]
  %v15 = vld [vmem:[%s1 + $0x18] sm:$0xff]
  %v16 = vld [vmem:[%s1 + $0x20] sm:$0xff]
  %v17 = vld [vmem:[%s1 + $0x28] sm:$0xff]
  %v18 = vld [vmem:[%s1 + $0x30] sm:$0x7]
  %v19 = vld [vmem:[%s1 + $0x38] sm:$0x7]
  %vm20 = vcmask 220160
  %v22 = vsel %vm20, %v11, 0
  %vm24 = vcmask 1042432
  %v26 = vsel %vm24, %v18, 0
  %v29 = vsel %vm24, %v19, 0
  %31 = vmatpush.msra.mxu0 0.0
  %32 = vmatpush.msra.mxu0 0.0
  %33 = vmatpush.msra.mxu0 0.0
  %34 = vmatpush.msra.mxu0 0.0
  %35 = vmatpush.msra.mxu0 0.0
  %36 = vmatpush.msra.mxu0 0.0
  %37 = vmatpush.msra.mxu0 0.0
  %38 = vmatpush.msra.mxu0 0.0
  %39 = vmatpush.msra.mxu0 0.0
  %40 = vmatpush.msra.mxu0 0.0
  %41 = vmatpush.msra.mxu0 0.0
  %42 = vmatpush.msra.mxu0 0.0
  %v43 = vand.u32 %v26, 4294901760
  %44 = vmatpush.msra.mxu0 %v43
  %v45 = vand.u32 %v16, 4294901760
  %46 = vmatpush.msra.mxu0 %v45
  %v47 = vand.u32 %v14, 4294901760
  %48 = vmatpush.msra.mxu0 %v47
  %v49 = vand.u32 %v12, 4294901760
  %50 = vmatpush.msra.mxu0 %v49
  %v51 = vand.u32 %v22, 4294901760
  %v52 = vsub.f32 %v22, %v51
  %v53 = vand.u32 %v52, 4294901760
  %v54 = vsub.f32 %v52, %v53
  %v55 = vand.u32 %v54, 4294901760
  %56 = vmatmul.f32.gmra.mxu0 %v55
  %v57 = vpop.f32.mrf.mxu0
  %v58 = vadd.f32 0.0, %v57
  %59 = vdwg.mxu0
  %60 = vmatpush.msra.mxu0 0.0
  %61 = vmatpush.msra.mxu0 0.0
  %62 = vmatpush.msra.mxu0 0.0
  %63 = vmatpush.msra.mxu0 0.0
  %64 = vmatpush.msra.mxu0 0.0
  %65 = vmatpush.msra.mxu0 0.0
  %66 = vmatpush.msra.mxu0 0.0
  %67 = vmatpush.msra.mxu0 0.0
  %68 = vmatpush.msra.mxu0 0.0
  %69 = vmatpush.msra.mxu0 0.0
  %70 = vmatpush.msra.mxu0 0.0
  %71 = vmatpush.msra.mxu0 0.0
  %v72 = vand.u32 %v26, 4294901760
  %v73 = vsub.f32 %v26, %v72
  %v74 = vand.u32 %v73, 4294901760
  %v75 = vsub.f32 %v73, %v74
  %v76 = vand.u32 %v75, 4294901760
  %77 = vmatpush.msra.mxu0 %v76
  %v78 = vand.u32 %v16, 4294901760
  %v79 = vsub.f32 %v16, %v78
  %v80 = vand.u32 %v79, 4294901760
  %v81 = vsub.f32 %v79, %v80
  %v82 = vand.u32 %v81, 4294901760
  %83 = vmatpush.msra.mxu0 %v82
  %v84 = vand.u32 %v14, 4294901760
  %v85 = vsub.f32 %v14, %v84
  %v86 = vand.u32 %v85, 4294901760
  %v87 = vsub.f32 %v85, %v86
  %v88 = vand.u32 %v87, 4294901760
  %89 = vmatpush.msra.mxu0 %v88
  %v90 = vand.u32 %v12, 4294901760
  %v91 = vsub.f32 %v12, %v90
  %v92 = vand.u32 %v91, 4294901760
  %v93 = vsub.f32 %v91, %v92
  %v94 = vand.u32 %v93, 4294901760
  %95 = vmatpush.msra.mxu0 %v94
  %v96 = vand.u32 %v22, 4294901760
  %97 = vmatmul.f32.gmra.mxu0 %v96
  %v98 = vpop.f32.mrf.mxu0
  %v99 = vadd.f32 %v58, %v98
  %100 = vdwg.mxu0
  %101 = vmatpush.msra.mxu0 0.0
  %102 = vmatpush.msra.mxu0 0.0
  %103 = vmatpush.msra.mxu0 0.0
  %104 = vmatpush.msra.mxu0 0.0
  %105 = vmatpush.msra.mxu0 0.0
  %106 = vmatpush.msra.mxu0 0.0
  %107 = vmatpush.msra.mxu0 0.0
  %108 = vmatpush.msra.mxu0 0.0
  %109 = vmatpush.msra.mxu0 0.0
  %110 = vmatpush.msra.mxu0 0.0
  %111 = vmatpush.msra.mxu0 0.0
  %112 = vmatpush.msra.mxu0 0.0
  %v113 = vand.u32 %v26, 4294901760
  %v114 = vsub.f32 %v26, %v113
  %115 = vmatpush.msra.mxu0 %v114
  %v116 = vand.u32 %v16, 4294901760
  %v117 = vsub.f32 %v16, %v116
  %118 = vmatpush.msra.mxu0 %v117
  %v119 = vand.u32 %v14, 4294901760
  %v120 = vsub.f32 %v14, %v119
  %121 = vmatpush.msra.mxu0 %v120
  %v122 = vand.u32 %v12, 4294901760
  %v123 = vsub.f32 %v12, %v122
  %124 = vmatpush.msra.mxu0 %v123
  %v125 = vand.u32 %v22, 4294901760
  %v126 = vsub.f32 %v22, %v125
  %127 = vmatmul.f32.gmra.mxu0 %v126
  %v128 = vpop.f32.mrf.mxu0
  %v129 = vadd.f32 %v99, %v128
  %130 = vdwg.mxu0
  %131 = vmatpush.msra.mxu0 0.0
  %132 = vmatpush.msra.mxu0 0.0
  %133 = vmatpush.msra.mxu0 0.0
  %134 = vmatpush.msra.mxu0 0.0
  %135 = vmatpush.msra.mxu0 0.0
  %136 = vmatpush.msra.mxu0 0.0
  %137 = vmatpush.msra.mxu0 0.0
  %138 = vmatpush.msra.mxu0 0.0
  %139 = vmatpush.msra.mxu0 0.0
  %140 = vmatpush.msra.mxu0 0.0
  %141 = vmatpush.msra.mxu0 0.0
  %142 = vmatpush.msra.mxu0 0.0
  %v143 = vand.u32 %v26, 4294901760
  %144 = vmatpush.msra.mxu0 %v143
  %v145 = vand.u32 %v16, 4294901760
  %146 = vmatpush.msra.mxu0 %v145
  %v147 = vand.u32 %v14, 4294901760
  %148 = vmatpush.msra.mxu0 %v147
  %v149 = vand.u32 %v12, 4294901760
  %150 = vmatpush.msra.mxu0 %v149
  %v151 = vand.u32 %v22, 4294901760
  %v152 = vsub.f32 %v22, %v151
  %v153 = vand.u32 %v152, 4294901760
  %154 = vmatmul.f32.gmra.mxu0 %v153
  %v155 = vpop.f32.mrf.mxu0
  %v156 = vadd.f32 %v129, %v155
  %157 = vdwg.mxu0
  %158 = vmatpush.msra.mxu0 0.0
  %159 = vmatpush.msra.mxu0 0.0
  %160 = vmatpush.msra.mxu0 0.0
  %161 = vmatpush.msra.mxu0 0.0
  %162 = vmatpush.msra.mxu0 0.0
  %163 = vmatpush.msra.mxu0 0.0
  %164 = vmatpush.msra.mxu0 0.0
  %165 = vmatpush.msra.mxu0 0.0
  %166 = vmatpush.msra.mxu0 0.0
  %167 = vmatpush.msra.mxu0 0.0
  %168 = vmatpush.msra.mxu0 0.0
  %169 = vmatpush.msra.mxu0 0.0
  %v170 = vand.u32 %v26, 4294901760
  %v171 = vsub.f32 %v26, %v170
  %v172 = vand.u32 %v171, 4294901760
  %173 = vmatpush.msra.mxu0 %v172
  %v174 = vand.u32 %v16, 4294901760
  %v175 = vsub.f32 %v16, %v174
  %v176 = vand.u32 %v175, 4294901760
  %177 = vmatpush.msra.mxu0 %v176
  %v178 = vand.u32 %v14, 4294901760
  %v179 = vsub.f32 %v14, %v178
  %v180 = vand.u32 %v179, 4294901760
  %181 = vmatpush.msra.mxu0 %v180
  %v182 = vand.u32 %v12, 4294901760
  %v183 = vsub.f32 %v12, %v182
  %v184 = vand.u32 %v183, 4294901760
  %185 = vmatpush.msra.mxu0 %v184
  %v186 = vand.u32 %v22, 4294901760
  %187 = vmatmul.f32.gmra.mxu0 %v186
  %v188 = vpop.f32.mrf.mxu0
  %v189 = vadd.f32 %v156, %v188
  %190 = vdwg.mxu0
  %191 = vmatpush.msra.mxu0 0.0
  %192 = vmatpush.msra.mxu0 0.0
  %193 = vmatpush.msra.mxu0 0.0
  %194 = vmatpush.msra.mxu0 0.0
  %195 = vmatpush.msra.mxu0 0.0
  %196 = vmatpush.msra.mxu0 0.0
  %197 = vmatpush.msra.mxu0 0.0
  %198 = vmatpush.msra.mxu0 0.0
  %199 = vmatpush.msra.mxu0 0.0
  %200 = vmatpush.msra.mxu0 0.0
  %201 = vmatpush.msra.mxu0 0.0
  %202 = vmatpush.msra.mxu0 0.0
  %v203 = vand.u32 %v26, 4294901760
  %204 = vmatpush.msra.mxu0 %v203
  %v205 = vand.u32 %v16, 4294901760
  %206 = vmatpush.msra.mxu0 %v205
  %v207 = vand.u32 %v14, 4294901760
  %208 = vmatpush.msra.mxu0 %v207
  %v209 = vand.u32 %v12, 4294901760
  %210 = vmatpush.msra.mxu0 %v209
  %v211 = vand.u32 %v22, 4294901760
  %212 = vmatmul.f32.gmra.mxu0 %v211
  %v213 = vpop.f32.mrf.mxu0
  %v214 = vadd.f32 %v189, %v213
  %215 = vdwg.mxu0
  %216 = vmatpush.msra.mxu0 0.0
  %217 = vmatpush.msra.mxu0 0.0
  %218 = vmatpush.msra.mxu0 0.0
  %219 = vmatpush.msra.mxu0 0.0
  %220 = vmatpush.msra.mxu0 0.0
  %221 = vmatpush.msra.mxu0 0.0
  %222 = vmatpush.msra.mxu0 0.0
  %223 = vmatpush.msra.mxu0 0.0
  %224 = vmatpush.msra.mxu0 0.0
  %225 = vmatpush.msra.mxu0 0.0
  %226 = vmatpush.msra.mxu0 0.0
  %227 = vmatpush.msra.mxu0 0.0
  %v228 = vand.u32 %v29, 4294901760
  %229 = vmatpush.msra.mxu0 %v228
  %v230 = vand.u32 %v17, 4294901760
  %231 = vmatpush.msra.mxu0 %v230
  %v232 = vand.u32 %v15, 4294901760
  %233 = vmatpush.msra.mxu0 %v232
  %v234 = vand.u32 %v13, 4294901760
  %235 = vmatpush.msra.mxu0 %v234
  %v236 = vand.u32 %v22, 4294901760
  %v237 = vsub.f32 %v22, %v236
  %v238 = vand.u32 %v237, 4294901760
  %v239 = vsub.f32 %v237, %v238
  %v240 = vand.u32 %v239, 4294901760
  %241 = vmatmul.f32.gmra.mxu0 %v240
  %v242 = vpop.f32.mrf.mxu0
  %v243 = vadd.f32 0.0, %v242
  %244 = vdwg.mxu0
  %245 = vmatpush.msra.mxu0 0.0
  %246 = vmatpush.msra.mxu0 0.0
  %247 = vmatpush.msra.mxu0 0.0
  %248 = vmatpush.msra.mxu0 0.0
  %249 = vmatpush.msra.mxu0 0.0
  %250 = vmatpush.msra.mxu0 0.0
  %251 = vmatpush.msra.mxu0 0.0
  %252 = vmatpush.msra.mxu0 0.0
  %253 = vmatpush.msra.mxu0 0.0
  %254 = vmatpush.msra.mxu0 0.0
  %255 = vmatpush.msra.mxu0 0.0
  %256 = vmatpush.msra.mxu0 0.0
  %v257 = vand.u32 %v29, 4294901760
  %v258 = vsub.f32 %v29, %v257
  %v259 = vand.u32 %v258, 4294901760
  %v260 = vsub.f32 %v258, %v259
  %v261 = vand.u32 %v260, 4294901760
  %262 = vmatpush.msra.mxu0 %v261
  %v263 = vand.u32 %v17, 4294901760
  %v264 = vsub.f32 %v17, %v263
  %v265 = vand.u32 %v264, 4294901760
  %v266 = vsub.f32 %v264, %v265
  %v267 = vand.u32 %v266, 4294901760
  %268 = vmatpush.msra.mxu0 %v267
  %v269 = vand.u32 %v15, 4294901760
  %v270 = vsub.f32 %v15, %v269
  %v271 = vand.u32 %v270, 4294901760
  %v272 = vsub.f32 %v270, %v271
  %v273 = vand.u32 %v272, 4294901760
  %274 = vmatpush.msra.mxu0 %v273
  %v275 = vand.u32 %v13, 4294901760
  %v276 = vsub.f32 %v13, %v275
  %v277 = vand.u32 %v276, 4294901760
  %v278 = vsub.f32 %v276, %v277
  %v279 = vand.u32 %v278, 4294901760
  %280 = vmatpush.msra.mxu0 %v279
  %v281 = vand.u32 %v22, 4294901760
  %282 = vmatmul.f32.gmra.mxu0 %v281
  %v283 = vpop.f32.mrf.mxu0
  %v284 = vadd.f32 %v243, %v283
  %285 = vdwg.mxu0
  %286 = vmatpush.msra.mxu0 0.0
  %287 = vmatpush.msra.mxu0 0.0
  %288 = vmatpush.msra.mxu0 0.0
  %289 = vmatpush.msra.mxu0 0.0
  %290 = vmatpush.msra.mxu0 0.0
  %291 = vmatpush.msra.mxu0 0.0
  %292 = vmatpush.msra.mxu0 0.0
  %293 = vmatpush.msra.mxu0 0.0
  %294 = vmatpush.msra.mxu0 0.0
  %295 = vmatpush.msra.mxu0 0.0
  %296 = vmatpush.msra.mxu0 0.0
  %297 = vmatpush.msra.mxu0 0.0
  %v298 = vand.u32 %v29, 4294901760
  %v299 = vsub.f32 %v29, %v298
  %300 = vmatpush.msra.mxu0 %v299
  %v301 = vand.u32 %v17, 4294901760
  %v302 = vsub.f32 %v17, %v301
  %303 = vmatpush.msra.mxu0 %v302
  %v304 = vand.u32 %v15, 4294901760
  %v305 = vsub.f32 %v15, %v304
  %306 = vmatpush.msra.mxu0 %v305
  %v307 = vand.u32 %v13, 4294901760
  %v308 = vsub.f32 %v13, %v307
  %309 = vmatpush.msra.mxu0 %v308
  %v310 = vand.u32 %v22, 4294901760
  %v311 = vsub.f32 %v22, %v310
  %312 = vmatmul.f32.gmra.mxu0 %v311
  %v313 = vpop.f32.mrf.mxu0
  %v314 = vadd.f32 %v284, %v313
  %315 = vdwg.mxu0
  %316 = vmatpush.msra.mxu0 0.0
  %317 = vmatpush.msra.mxu0 0.0
  %318 = vmatpush.msra.mxu0 0.0
  %319 = vmatpush.msra.mxu0 0.0
  %320 = vmatpush.msra.mxu0 0.0
  %321 = vmatpush.msra.mxu0 0.0
  %322 = vmatpush.msra.mxu0 0.0
  %323 = vmatpush.msra.mxu0 0.0
  %324 = vmatpush.msra.mxu0 0.0
  %325 = vmatpush.msra.mxu0 0.0
  %326 = vmatpush.msra.mxu0 0.0
  %327 = vmatpush.msra.mxu0 0.0
  %v328 = vand.u32 %v29, 4294901760
  %329 = vmatpush.msra.mxu0 %v328
  %v330 = vand.u32 %v17, 4294901760
  %331 = vmatpush.msra.mxu0 %v330
  %v332 = vand.u32 %v15, 4294901760
  %333 = vmatpush.msra.mxu0 %v332
  %v334 = vand.u32 %v13, 4294901760
  %335 = vmatpush.msra.mxu0 %v334
  %v336 = vand.u32 %v22, 4294901760
  %v337 = vsub.f32 %v22, %v336
  %v338 = vand.u32 %v337, 4294901760
  %339 = vmatmul.f32.gmra.mxu0 %v338
  %v340 = vpop.f32.mrf.mxu0
  %v341 = vadd.f32 %v314, %v340
  %342 = vdwg.mxu0
  %343 = vmatpush.msra.mxu0 0.0
  %344 = vmatpush.msra.mxu0 0.0
  %345 = vmatpush.msra.mxu0 0.0
  %346 = vmatpush.msra.mxu0 0.0
  %347 = vmatpush.msra.mxu0 0.0
  %348 = vmatpush.msra.mxu0 0.0
  %349 = vmatpush.msra.mxu0 0.0
  %350 = vmatpush.msra.mxu0 0.0
  %351 = vmatpush.msra.mxu0 0.0
  %352 = vmatpush.msra.mxu0 0.0
  %353 = vmatpush.msra.mxu0 0.0
  %354 = vmatpush.msra.mxu0 0.0
  %v355 = vand.u32 %v29, 4294901760
  %v356 = vsub.f32 %v29, %v355
  %v357 = vand.u32 %v356, 4294901760
  %358 = vmatpush.msra.mxu0 %v357
  %v359 = vand.u32 %v17, 4294901760
  %v360 = vsub.f32 %v17, %v359
  %v361 = vand.u32 %v360, 4294901760
  %362 = vmatpush.msra.mxu0 %v361
  %v363 = vand.u32 %v15, 4294901760
  %v364 = vsub.f32 %v15, %v363
  %v365 = vand.u32 %v364, 4294901760
  %366 = vmatpush.msra.mxu0 %v365
  %v367 = vand.u32 %v13, 4294901760
  %v368 = vsub.f32 %v13, %v367
  %v369 = vand.u32 %v368, 4294901760
  %370 = vmatpush.msra.mxu0 %v369
  %v371 = vand.u32 %v22, 4294901760
  %372 = vmatmul.f32.gmra.mxu0 %v371
  %v373 = vpop.f32.mrf.mxu0
  %v374 = vadd.f32 %v341, %v373
  %375 = vdwg.mxu0
  %376 = vmatpush.msra.mxu0 0.0
  %377 = vmatpush.msra.mxu0 0.0
  %378 = vmatpush.msra.mxu0 0.0
  %379 = vmatpush.msra.mxu0 0.0
  %380 = vmatpush.msra.mxu0 0.0
  %381 = vmatpush.msra.mxu0 0.0
  %382 = vmatpush.msra.mxu0 0.0
  %383 = vmatpush.msra.mxu0 0.0
  %384 = vmatpush.msra.mxu0 0.0
  %385 = vmatpush.msra.mxu0 0.0
  %386 = vmatpush.msra.mxu0 0.0
  %387 = vmatpush.msra.mxu0 0.0
  %v388 = vand.u32 %v29, 4294901760
  %389 = vmatpush.msra.mxu0 %v388
  %v390 = vand.u32 %v17, 4294901760
  %391 = vmatpush.msra.mxu0 %v390
  %v392 = vand.u32 %v15, 4294901760
  %393 = vmatpush.msra.mxu0 %v392
  %v394 = vand.u32 %v13, 4294901760
  %395 = vmatpush.msra.mxu0 %v394
  %v396 = vand.u32 %v22, 4294901760
  %397 = vmatmul.f32.gmra.mxu0 %v396
  %v398 = vpop.f32.mrf.mxu0
  %v399 = vadd.f32 %v374, %v398
  %400 = vdwg.mxu0
  %v401 = vtanh.pop %v214
  %v402 = vtanh.pop %v399
  %v405 = vrot.slane %v402, 4
  %vm406 = vcmask 1043456
  %v407 = vsel %vm406, %v401, %v405
  %409 = vst [vmem:[%s2] sm:$0x77] %v407
  %s410 = scalar_lea.vmem %s1, 64
  %v411 = vld [vmem:[%s410] sm:$0xff]
  %v412 = vld [vmem:[%s410 + $0x8] sm:$0xff]
  %v413 = vld [vmem:[%s410 + $0x10] sm:$0xff]
  %v414 = vld [vmem:[%s410 + $0x18] sm:$0xff]
  %v415 = vld [vmem:[%s410 + $0x20] sm:$0xff]
  %v416 = vld [vmem:[%s410 + $0x28] sm:$0xff]
  %v417 = vld [vmem:[%s410 + $0x30] sm:$0x7]
  %v418 = vld [vmem:[%s410 + $0x38] sm:$0x7]
  %v420 = vsel %vm24, %v417, 0
  %v423 = vsel %vm24, %v418, 0
  %425 = vmatpush.msra.mxu0 0.0
  %426 = vmatpush.msra.mxu0 0.0
  %427 = vmatpush.msra.mxu0 0.0
  %428 = vmatpush.msra.mxu0 0.0
  %429 = vmatpush.msra.mxu0 0.0
  %430 = vmatpush.msra.mxu0 0.0
  %431 = vmatpush.msra.mxu0 0.0
  %432 = vmatpush.msra.mxu0 0.0
  %433 = vmatpush.msra.mxu0 0.0
  %434 = vmatpush.msra.mxu0 0.0
  %435 = vmatpush.msra.mxu0 0.0
  %436 = vmatpush.msra.mxu0 0.0
  %v437 = vand.u32 %v420, 4294901760
  %438 = vmatpush.msra.mxu0 %v437
  %v439 = vand.u32 %v415, 4294901760
  %440 = vmatpush.msra.mxu0 %v439
  %v441 = vand.u32 %v413, 4294901760
  %442 = vmatpush.msra.mxu0 %v441
  %v443 = vand.u32 %v411, 4294901760
  %444 = vmatpush.msra.mxu0 %v443
  %v445 = vand.u32 %v22, 4294901760
  %v446 = vsub.f32 %v22, %v445
  %v447 = vand.u32 %v446, 4294901760
  %v448 = vsub.f32 %v446, %v447
  %v449 = vand.u32 %v448, 4294901760
  %450 = vmatmul.f32.gmra.mxu0 %v449
  %v451 = vpop.f32.mrf.mxu0
  %v452 = vadd.f32 0.0, %v451
  %453 = vdwg.mxu0
  %454 = vmatpush.msra.mxu0 0.0
  %455 = vmatpush.msra.mxu0 0.0
  %456 = vmatpush.msra.mxu0 0.0
  %457 = vmatpush.msra.mxu0 0.0
  %458 = vmatpush.msra.mxu0 0.0
  %459 = vmatpush.msra.mxu0 0.0
  %460 = vmatpush.msra.mxu0 0.0
  %461 = vmatpush.msra.mxu0 0.0
  %462 = vmatpush.msra.mxu0 0.0
  %463 = vmatpush.msra.mxu0 0.0
  %464 = vmatpush.msra.mxu0 0.0
  %465 = vmatpush.msra.mxu0 0.0
  %v466 = vand.u32 %v420, 4294901760
  %v467 = vsub.f32 %v420, %v466
  %v468 = vand.u32 %v467, 4294901760
  %v469 = vsub.f32 %v467, %v468
  %v470 = vand.u32 %v469, 4294901760
  %471 = vmatpush.msra.mxu0 %v470
  %v472 = vand.u32 %v415, 4294901760
  %v473 = vsub.f32 %v415, %v472
  %v474 = vand.u32 %v473, 4294901760
  %v475 = vsub.f32 %v473, %v474
  %v476 = vand.u32 %v475, 4294901760
  %477 = vmatpush.msra.mxu0 %v476
  %v478 = vand.u32 %v413, 4294901760
  %v479 = vsub.f32 %v413, %v478
  %v480 = vand.u32 %v479, 4294901760
  %v481 = vsub.f32 %v479, %v480
  %v482 = vand.u32 %v481, 4294901760
  %483 = vmatpush.msra.mxu0 %v482
  %v484 = vand.u32 %v411, 4294901760
  %v485 = vsub.f32 %v411, %v484
  %v486 = vand.u32 %v485, 4294901760
  %v487 = vsub.f32 %v485, %v486
  %v488 = vand.u32 %v487, 4294901760
  %489 = vmatpush.msra.mxu0 %v488
  %v490 = vand.u32 %v22, 4294901760
  %491 = vmatmul.f32.gmra.mxu0 %v490
  %v492 = vpop.f32.mrf.mxu0
  %v493 = vadd.f32 %v452, %v492
  %494 = vdwg.mxu0
  %495 = vmatpush.msra.mxu0 0.0
  %496 = vmatpush.msra.mxu0 0.0
  %497 = vmatpush.msra.mxu0 0.0
  %498 = vmatpush.msra.mxu0 0.0
  %499 = vmatpush.msra.mxu0 0.0
  %500 = vmatpush.msra.mxu0 0.0
  %501 = vmatpush.msra.mxu0 0.0
  %502 = vmatpush.msra.mxu0 0.0
  %503 = vmatpush.msra.mxu0 0.0
  %504 = vmatpush.msra.mxu0 0.0
  %505 = vmatpush.msra.mxu0 0.0
  %506 = vmatpush.msra.mxu0 0.0
  %v507 = vand.u32 %v420, 4294901760
  %v508 = vsub.f32 %v420, %v507
  %509 = vmatpush.msra.mxu0 %v508
  %v510 = vand.u32 %v415, 4294901760
  %v511 = vsub.f32 %v415, %v510
  %512 = vmatpush.msra.mxu0 %v511
  %v513 = vand.u32 %v413, 4294901760
  %v514 = vsub.f32 %v413, %v513
  %515 = vmatpush.msra.mxu0 %v514
  %v516 = vand.u32 %v411, 4294901760
  %v517 = vsub.f32 %v411, %v516
  %518 = vmatpush.msra.mxu0 %v517
  %v519 = vand.u32 %v22, 4294901760
  %v520 = vsub.f32 %v22, %v519
  %521 = vmatmul.f32.gmra.mxu0 %v520
  %v522 = vpop.f32.mrf.mxu0
  %v523 = vadd.f32 %v493, %v522
  %524 = vdwg.mxu0
  %525 = vmatpush.msra.mxu0 0.0
  %526 = vmatpush.msra.mxu0 0.0
  %527 = vmatpush.msra.mxu0 0.0
  %528 = vmatpush.msra.mxu0 0.0
  %529 = vmatpush.msra.mxu0 0.0
  %530 = vmatpush.msra.mxu0 0.0
  %531 = vmatpush.msra.mxu0 0.0
  %532 = vmatpush.msra.mxu0 0.0
  %533 = vmatpush.msra.mxu0 0.0
  %534 = vmatpush.msra.mxu0 0.0
  %535 = vmatpush.msra.mxu0 0.0
  %536 = vmatpush.msra.mxu0 0.0
  %v537 = vand.u32 %v420, 4294901760
  %538 = vmatpush.msra.mxu0 %v537
  %v539 = vand.u32 %v415, 4294901760
  %540 = vmatpush.msra.mxu0 %v539
  %v541 = vand.u32 %v413, 4294901760
  %542 = vmatpush.msra.mxu0 %v541
  %v543 = vand.u32 %v411, 4294901760
  %544 = vmatpush.msra.mxu0 %v543
  %v545 = vand.u32 %v22, 4294901760
  %v546 = vsub.f32 %v22, %v545
  %v547 = vand.u32 %v546, 4294901760
  %548 = vmatmul.f32.gmra.mxu0 %v547
  %v549 = vpop.f32.mrf.mxu0
  %v550 = vadd.f32 %v523, %v549
  %551 = vdwg.mxu0
  %552 = vmatpush.msra.mxu0 0.0
  %553 = vmatpush.msra.mxu0 0.0
  %554 = vmatpush.msra.mxu0 0.0
  %555 = vmatpush.msra.mxu0 0.0
  %556 = vmatpush.msra.mxu0 0.0
  %557 = vmatpush.msra.mxu0 0.0
  %558 = vmatpush.msra.mxu0 0.0
  %559 = vmatpush.msra.mxu0 0.0
  %560 = vmatpush.msra.mxu0 0.0
  %561 = vmatpush.msra.mxu0 0.0
  %562 = vmatpush.msra.mxu0 0.0
  %563 = vmatpush.msra.mxu0 0.0
  %v564 = vand.u32 %v420, 4294901760
  %v565 = vsub.f32 %v420, %v564
  %v566 = vand.u32 %v565, 4294901760
  %567 = vmatpush.msra.mxu0 %v566
  %v568 = vand.u32 %v415, 4294901760
  %v569 = vsub.f32 %v415, %v568
  %v570 = vand.u32 %v569, 4294901760
  %571 = vmatpush.msra.mxu0 %v570
  %v572 = vand.u32 %v413, 4294901760
  %v573 = vsub.f32 %v413, %v572
  %v574 = vand.u32 %v573, 4294901760
  %575 = vmatpush.msra.mxu0 %v574
  %v576 = vand.u32 %v411, 4294901760
  %v577 = vsub.f32 %v411, %v576
  %v578 = vand.u32 %v577, 4294901760
  %579 = vmatpush.msra.mxu0 %v578
  %v580 = vand.u32 %v22, 4294901760
  %581 = vmatmul.f32.gmra.mxu0 %v580
  %v582 = vpop.f32.mrf.mxu0
  %v583 = vadd.f32 %v550, %v582
  %584 = vdwg.mxu0
  %585 = vmatpush.msra.mxu0 0.0
  %586 = vmatpush.msra.mxu0 0.0
  %587 = vmatpush.msra.mxu0 0.0
  %588 = vmatpush.msra.mxu0 0.0
  %589 = vmatpush.msra.mxu0 0.0
  %590 = vmatpush.msra.mxu0 0.0
  %591 = vmatpush.msra.mxu0 0.0
  %592 = vmatpush.msra.mxu0 0.0
  %593 = vmatpush.msra.mxu0 0.0
  %594 = vmatpush.msra.mxu0 0.0
  %595 = vmatpush.msra.mxu0 0.0
  %596 = vmatpush.msra.mxu0 0.0
  %v597 = vand.u32 %v420, 4294901760
  %598 = vmatpush.msra.mxu0 %v597
  %v599 = vand.u32 %v415, 4294901760
  %600 = vmatpush.msra.mxu0 %v599
  %v601 = vand.u32 %v413, 4294901760
  %602 = vmatpush.msra.mxu0 %v601
  %v603 = vand.u32 %v411, 4294901760
  %604 = vmatpush.msra.mxu0 %v603
  %v605 = vand.u32 %v22, 4294901760
  %606 = vmatmul.f32.gmra.mxu0 %v605
  %v607 = vpop.f32.mrf.mxu0
  %v608 = vadd.f32 %v583, %v607
  %609 = vdwg.mxu0
  %610 = vmatpush.msra.mxu0 0.0
  %611 = vmatpush.msra.mxu0 0.0
  %612 = vmatpush.msra.mxu0 0.0
  %613 = vmatpush.msra.mxu0 0.0
  %614 = vmatpush.msra.mxu0 0.0
  %615 = vmatpush.msra.mxu0 0.0
  %616 = vmatpush.msra.mxu0 0.0
  %617 = vmatpush.msra.mxu0 0.0
  %618 = vmatpush.msra.mxu0 0.0
  %619 = vmatpush.msra.mxu0 0.0
  %620 = vmatpush.msra.mxu0 0.0
  %621 = vmatpush.msra.mxu0 0.0
  %v622 = vand.u32 %v423, 4294901760
  %623 = vmatpush.msra.mxu0 %v622
  %v624 = vand.u32 %v416, 4294901760
  %625 = vmatpush.msra.mxu0 %v624
  %v626 = vand.u32 %v414, 4294901760
  %627 = vmatpush.msra.mxu0 %v626
  %v628 = vand.u32 %v412, 4294901760
  %629 = vmatpush.msra.mxu0 %v628
  %v630 = vand.u32 %v22, 4294901760
  %v631 = vsub.f32 %v22, %v630
  %v632 = vand.u32 %v631, 4294901760
  %v633 = vsub.f32 %v631, %v632
  %v634 = vand.u32 %v633, 4294901760
  %635 = vmatmul.f32.gmra.mxu0 %v634
  %v636 = vpop.f32.mrf.mxu0
  %v637 = vadd.f32 0.0, %v636
  %638 = vdwg.mxu0
  %639 = vmatpush.msra.mxu0 0.0
  %640 = vmatpush.msra.mxu0 0.0
  %641 = vmatpush.msra.mxu0 0.0
  %642 = vmatpush.msra.mxu0 0.0
  %643 = vmatpush.msra.mxu0 0.0
  %644 = vmatpush.msra.mxu0 0.0
  %645 = vmatpush.msra.mxu0 0.0
  %646 = vmatpush.msra.mxu0 0.0
  %647 = vmatpush.msra.mxu0 0.0
  %648 = vmatpush.msra.mxu0 0.0
  %649 = vmatpush.msra.mxu0 0.0
  %650 = vmatpush.msra.mxu0 0.0
  %v651 = vand.u32 %v423, 4294901760
  %v652 = vsub.f32 %v423, %v651
  %v653 = vand.u32 %v652, 4294901760
  %v654 = vsub.f32 %v652, %v653
  %v655 = vand.u32 %v654, 4294901760
  %656 = vmatpush.msra.mxu0 %v655
  %v657 = vand.u32 %v416, 4294901760
  %v658 = vsub.f32 %v416, %v657
  %v659 = vand.u32 %v658, 4294901760
  %v660 = vsub.f32 %v658, %v659
  %v661 = vand.u32 %v660, 4294901760
  %662 = vmatpush.msra.mxu0 %v661
  %v663 = vand.u32 %v414, 4294901760
  %v664 = vsub.f32 %v414, %v663
  %v665 = vand.u32 %v664, 4294901760
  %v666 = vsub.f32 %v664, %v665
  %v667 = vand.u32 %v666, 4294901760
  %668 = vmatpush.msra.mxu0 %v667
  %v669 = vand.u32 %v412, 4294901760
  %v670 = vsub.f32 %v412, %v669
  %v671 = vand.u32 %v670, 4294901760
  %v672 = vsub.f32 %v670, %v671
  %v673 = vand.u32 %v672, 4294901760
  %674 = vmatpush.msra.mxu0 %v673
  %v675 = vand.u32 %v22, 4294901760
  %676 = vmatmul.f32.gmra.mxu0 %v675
  %v677 = vpop.f32.mrf.mxu0
  %v678 = vadd.f32 %v637, %v677
  %679 = vdwg.mxu0
  %680 = vmatpush.msra.mxu0 0.0
  %681 = vmatpush.msra.mxu0 0.0
  %682 = vmatpush.msra.mxu0 0.0
  %683 = vmatpush.msra.mxu0 0.0
  %684 = vmatpush.msra.mxu0 0.0
  %685 = vmatpush.msra.mxu0 0.0
  %686 = vmatpush.msra.mxu0 0.0
  %687 = vmatpush.msra.mxu0 0.0
  %688 = vmatpush.msra.mxu0 0.0
  %689 = vmatpush.msra.mxu0 0.0
  %690 = vmatpush.msra.mxu0 0.0
  %691 = vmatpush.msra.mxu0 0.0
  %v692 = vand.u32 %v423, 4294901760
  %v693 = vsub.f32 %v423, %v692
  %694 = vmatpush.msra.mxu0 %v693
  %v695 = vand.u32 %v416, 4294901760
  %v696 = vsub.f32 %v416, %v695
  %697 = vmatpush.msra.mxu0 %v696
  %v698 = vand.u32 %v414, 4294901760
  %v699 = vsub.f32 %v414, %v698
  %700 = vmatpush.msra.mxu0 %v699
  %v701 = vand.u32 %v412, 4294901760
  %v702 = vsub.f32 %v412, %v701
  %703 = vmatpush.msra.mxu0 %v702
  %v704 = vand.u32 %v22, 4294901760
  %v705 = vsub.f32 %v22, %v704
  %706 = vmatmul.f32.gmra.mxu0 %v705
  %v707 = vpop.f32.mrf.mxu0
  %v708 = vadd.f32 %v678, %v707
  %709 = vdwg.mxu0
  %710 = vmatpush.msra.mxu0 0.0
  %711 = vmatpush.msra.mxu0 0.0
  %712 = vmatpush.msra.mxu0 0.0
  %713 = vmatpush.msra.mxu0 0.0
  %714 = vmatpush.msra.mxu0 0.0
  %715 = vmatpush.msra.mxu0 0.0
  %716 = vmatpush.msra.mxu0 0.0
  %717 = vmatpush.msra.mxu0 0.0
  %718 = vmatpush.msra.mxu0 0.0
  %719 = vmatpush.msra.mxu0 0.0
  %720 = vmatpush.msra.mxu0 0.0
  %721 = vmatpush.msra.mxu0 0.0
  %v722 = vand.u32 %v423, 4294901760
  %723 = vmatpush.msra.mxu0 %v722
  %v724 = vand.u32 %v416, 4294901760
  %725 = vmatpush.msra.mxu0 %v724
  %v726 = vand.u32 %v414, 4294901760
  %727 = vmatpush.msra.mxu0 %v726
  %v728 = vand.u32 %v412, 4294901760
  %729 = vmatpush.msra.mxu0 %v728
  %v730 = vand.u32 %v22, 4294901760
  %v731 = vsub.f32 %v22, %v730
  %v732 = vand.u32 %v731, 4294901760
  %733 = vmatmul.f32.gmra.mxu0 %v732
  %v734 = vpop.f32.mrf.mxu0
  %v735 = vadd.f32 %v708, %v734
  %736 = vdwg.mxu0
  %737 = vmatpush.msra.mxu0 0.0
  %738 = vmatpush.msra.mxu0 0.0
  %739 = vmatpush.msra.mxu0 0.0
  %740 = vmatpush.msra.mxu0 0.0
  %741 = vmatpush.msra.mxu0 0.0
  %742 = vmatpush.msra.mxu0 0.0
  %743 = vmatpush.msra.mxu0 0.0
  %744 = vmatpush.msra.mxu0 0.0
  %745 = vmatpush.msra.mxu0 0.0
  %746 = vmatpush.msra.mxu0 0.0
  %747 = vmatpush.msra.mxu0 0.0
  %748 = vmatpush.msra.mxu0 0.0
  %v749 = vand.u32 %v423, 4294901760
  %v750 = vsub.f32 %v423, %v749
  %v751 = vand.u32 %v750, 4294901760
  %752 = vmatpush.msra.mxu0 %v751
  %v753 = vand.u32 %v416, 4294901760
  %v754 = vsub.f32 %v416, %v753
  %v755 = vand.u32 %v754, 4294901760
  %756 = vmatpush.msra.mxu0 %v755
  %v757 = vand.u32 %v414, 4294901760
  %v758 = vsub.f32 %v414, %v757
  %v759 = vand.u32 %v758, 4294901760
  %760 = vmatpush.msra.mxu0 %v759
  %v761 = vand.u32 %v412, 4294901760
  %v762 = vsub.f32 %v412, %v761
  %v763 = vand.u32 %v762, 4294901760
  %764 = vmatpush.msra.mxu0 %v763
  %v765 = vand.u32 %v22, 4294901760
  %766 = vmatmul.f32.gmra.mxu0 %v765
  %v767 = vpop.f32.mrf.mxu0
  %v768 = vadd.f32 %v735, %v767
  %769 = vdwg.mxu0
  %770 = vmatpush.msra.mxu0 0.0
  %771 = vmatpush.msra.mxu0 0.0
  %772 = vmatpush.msra.mxu0 0.0
  %773 = vmatpush.msra.mxu0 0.0
  %774 = vmatpush.msra.mxu0 0.0
  %775 = vmatpush.msra.mxu0 0.0
  %776 = vmatpush.msra.mxu0 0.0
  %777 = vmatpush.msra.mxu0 0.0
  %778 = vmatpush.msra.mxu0 0.0
  %779 = vmatpush.msra.mxu0 0.0
  %780 = vmatpush.msra.mxu0 0.0
  %781 = vmatpush.msra.mxu0 0.0
  %v782 = vand.u32 %v423, 4294901760
  %783 = vmatpush.msra.mxu0 %v782
  %v784 = vand.u32 %v416, 4294901760
  %785 = vmatpush.msra.mxu0 %v784
  %v786 = vand.u32 %v414, 4294901760
  %787 = vmatpush.msra.mxu0 %v786
  %v788 = vand.u32 %v412, 4294901760
  %789 = vmatpush.msra.mxu0 %v788
  %v790 = vand.u32 %v22, 4294901760
  %791 = vmatmul.f32.gmra.mxu0 %v790
  %v792 = vpop.f32.mrf.mxu0
  %v793 = vadd.f32 %v768, %v792
  %794 = vdwg.mxu0
  %v795 = vtanh.pop %v608
  %v796 = vtanh.pop %v793
  %v799 = vrot.slane %v796, 4
  %v800 = vsel %vm406, %v795, %v799
  %s802 = scalar_lea.vmem %s2, 8
  %803 = vst [vmem:[%s802] sm:$0x77] %v800
  // Predicated region
  $region10: #{tpu_custom_call.1} parent=0 // pred_check
    _
  $region11: #{tpu_custom_call.1} parent=0 // pred_check_branch
    %805 = sbr.rel (0) target = $region13
  $region12: #{tpu_custom_call.1} parent=0 // pred_region
    _
  $region13: #{tpu_custom_call.1} parent=0 // pred_fallthru
    _
  // Predicated region
  $region14: #{tpu_custom_call.1} parent=0 // pred_check
    _
  $region15: #{tpu_custom_call.1} parent=0 // pred_check_branch
    %807 = sbr.rel (0) target = $region17
  $region16: #{tpu_custom_call.1} parent=0 // pred_region
    _
  $region17: #{tpu_custom_call.1} parent=0 // pred_fallthru
    _

</llo_original>
